<compile_context>
chip_gen: v7x
topology: tpu7x:2x2x1
jax: 0.10.0
libtpu: 0.0.40
codegen_flags: <defaults>
</compile_context>

<pallas_src>
import functools

import numpy as np

import jax
import jax.numpy as jnp
from jax.experimental import pallas as pl
from jax.experimental.pallas import tpu as pltpu


def _perm_equi1_mean_kernel(x_ref, wt_ref, b_ref, o_ref, *, center_after):
    """One grid step: TB independent sets, one fused MXU matmul."""
    x = x_ref[...]                                   # (TB, N, in), compute dtype
    b = b_ref[...].astype(jnp.float32)               # (1, out)
    if center_after:
        # Linearity: mean_n(x @ Wt) == mean_n(x) @ Wt.  Matmul the raw block
        # (no f32 copy / relayout of the wide operand), center in output space.
        z = jnp.einsum("bni,io->bno", x, wt_ref[...],
                       preferred_element_type=jnp.float32)     # (TB, N, out) f32
        y = z - jnp.mean(z, axis=1, keepdims=True) + b
    else:
        xf = x.astype(jnp.float32)
        xc = (xf - jnp.mean(xf, axis=1, keepdims=True)).astype(x.dtype)
        y = jnp.einsum("bni,io->bno", xc, wt_ref[...],
                       preferred_element_type=jnp.float32) + b
    o_ref[...] = y.astype(o_ref.dtype)


def _vmem_budget_bytes():
    """Generation-aware scoped-VMEM budget with headroom for Mosaic scratch."""
    try:
        cap = int(pltpu.get_tpu_info().vmem_capacity_bytes)
    except Exception:
        cap = 64 << 20          # conservative fallback: v7x-class 64 MiB VMEM
    # v7x (64 MiB physical) -> ~48 MiB usable; v5e/v6e (128 MiB) -> ~96 MiB.
    return max(min(cap - (16 << 20), 96 << 20), 16 << 20)


def perm_equi1_mean_pallas(x, weight, bias, *, tb=None,
                           compute_dtype=jnp.float32, out_dtype=None):
    """PermEqui1_mean forward.

    x:      (B, N, in_dim)
    weight: (out_dim, in_dim)   -- PyTorch nn.Linear layout
    bias:   (out_dim,)
    returns (B, N, out_dim) in `out_dtype` (default: x.dtype)
    """
    B, N, in_dim = x.shape
    out_dim = weight.shape[0]
    compute_dtype = np.dtype(compute_dtype)
    out_dtype = np.dtype(out_dtype) if out_dtype is not None else np.dtype(x.dtype)

    # Cast operands wrapper-side so the bf16 path actually halves HBM traffic
    # (in-kernel casts would not reduce the bytes read).
    x = jnp.asarray(x).astype(compute_dtype)
    wt = jnp.asarray(weight).T.astype(compute_dtype)        # (in, out)
    b = jnp.asarray(bias).reshape(1, out_dim).astype(jnp.float32)

    center_after = out_dim <= in_dim      # center in the smaller space

    # ---- VMEM-driven tile size ------------------------------------------
    x_row = N * in_dim * compute_dtype.itemsize              # one set of x
    o_row = N * out_dim * out_dtype.itemsize                 # one set of output
    if center_after:
        interm_row = 2 * N * out_dim * 4                     # z, (z - zm) in f32
    else:
        interm_row = 2 * N * in_dim * 4 + N * out_dim * 4    # xf, xc, z in f32
    per_tb = 2 * (x_row + o_row) + interm_row                # double-buffered blocks
    w_resident = 2 * (in_dim * out_dim * compute_dtype.itemsize + out_dim * 4)

    cap = _vmem_budget_bytes()
    if tb is None:
        tb_vmem = max(1, (cap - w_resident) // per_tb)
        # ~2048 matmul rows (TB*N) per step: near the HBM roofline, amortized
        # grid overhead, and a well-fed MXU M dimension on all generations.
        tb = min(B, tb_vmem, max(1, pl.cdiv(2048, N)))
        if B > 1:
            tb = min(tb, pl.cdiv(B, 2))   # >= 2 grid steps: both v7x TCs get work
        # Prefer an exact divisor of B (no ragged last block) if it costs < 2x.
        for d in range(tb, max(tb // 2, 1) - 1, -1):
            if B % d == 0:
                tb = d
                break
    tb = int(max(1, min(tb, B)))
    grid = (pl.cdiv(B, tb),)              # ragged last block OK: sets independent

    need = per_tb * tb + w_resident
    vmem_limit = int(min(cap, max(2 * need, 8 << 20)))

    kernel = functools.partial(_perm_equi1_mean_kernel, center_after=center_after)

    return pl.pallas_call(
        kernel,
        out_shape=jax.ShapeDtypeStruct((B, N, out_dim), out_dtype),
        grid_spec=pltpu.PrefetchScalarGridSpec(
            num_scalar_prefetch=0,
            grid=grid,
            in_specs=[
                pl.BlockSpec((tb, N, in_dim), lambda i: (i, 0, 0)),
                pl.BlockSpec((in_dim, out_dim), lambda i: (0, 0)),   # resident
                pl.BlockSpec((1, out_dim), lambda i: (0, 0)),        # resident
            ],
            out_specs=pl.BlockSpec((tb, N, out_dim), lambda i: (i, 0, 0)),
        ),
        compiler_params=pltpu.CompilerParams(
            dimension_semantics=("parallel",),
            vmem_limit_bytes=vmem_limit,
        ),
    )(x, wt, b)


def perm_equi1_mean_ref(x, weight, bias):
    """Pure-JAX reference matching the PyTorch forward."""
    xm = jnp.mean(x, axis=1, keepdims=True)
    return (x - xm) @ weight.T + bias


if __name__ == "__main__":
    key = jax.random.PRNGKey(0)
    cases = [
        (8, 8, 16, 32),   # out_dim > in_dim  -> pre-matmul centering path
        (8, 8, 32, 16),   # out_dim <= in_dim -> post-matmul (linearity) path
        (7, 8, 16, 32),   # B not divisible by TB -> ragged last block, no pad
    ]
    for (B, N, in_dim, out_dim) in cases:
        key, kx, kw, kb = jax.random.split(key, 4)
        x = jax.random.normal(kx, (B, N, in_dim), dtype=jnp.float32)
        # nn.Linear-style init: U(-1/sqrt(fan_in), +1/sqrt(fan_in))
        bound = 1.0 / float(in_dim) ** 0.5
        weight = jax.random.uniform(kw, (out_dim, in_dim), jnp.float32, -bound, bound)
        bias = jax.random.uniform(kb, (out_dim,), jnp.float32, -bound, bound)

        out = jax.block_until_ready(perm_equi1_mean_pallas(x, weight, bias))
        ref = perm_equi1_mean_ref(x, weight, bias)
        assert out.shape == ref.shape, (out.shape, ref.shape)
        max_err = float(jnp.max(jnp.abs(out - ref)))
        assert jnp.allclose(out, ref, atol=1e-5, rtol=1e-5), \
            (B, N, in_dim, out_dim, max_err)
    print("KERNEL_OK")
</pallas_src>

<mosaic_0001>
module attributes {stable_mosaic.version = 11 : i64} {
  func.func @_perm_equi1_mean_kernel(%arg0: i32, %arg1: memref<4x8x16xf32, #tpu.memory_space<vmem>>, %arg2: memref<16x32xf32, #tpu.memory_space<vmem>>, %arg3: memref<1x32xf32, #tpu.memory_space<vmem>>, %arg4: memref<4x8x32xf32, #tpu.memory_space<vmem>>) attributes {dimension_semantics = [#tpu.dimension_semantics<parallel>], iteration_bounds = array<i64: 2>, scalar_prefetch = 0 : i64, scratch_operands = 0 : i64, tpu.core_type = #tpu.core_type<tc>, window_params = [{transform_indices = @transform_0, window_bounds = array<i64: 4, 8, 16>}, {pipeline_mode = #tpu.pipeline_mode<synchronous>, transform_indices = @transform_1, window_bounds = array<i64: 16, 32>}, {pipeline_mode = #tpu.pipeline_mode<synchronous>, transform_indices = @transform_2, window_bounds = array<i64: 1, 32>}, {transform_indices = @transform_3, window_bounds = array<i64: 4, 8, 32>}]} {
    %c0 = arith.constant 0 : index
    %c0_0 = arith.constant 0 : index
    %c0_1 = arith.constant 0 : index
    %0 = vector.load %arg1[%c0, %c0_0, %c0_1] : memref<4x8x16xf32, #tpu.memory_space<vmem>>, vector<4x8x16xf32>
    %c0_2 = arith.constant 0 : index
    %c0_3 = arith.constant 0 : index
    %1 = vector.load %arg3[%c0_2, %c0_3] : memref<1x32xf32, #tpu.memory_space<vmem>>, vector<1x32xf32>
    %cst = arith.constant dense<0.000000e+00> : vector<4x16xf32>
    %2 = vector.multi_reduction <add>, %0, %cst [1] : vector<4x8x16xf32> to vector<4x16xf32>
    %3 = vector.shape_cast %2 : vector<4x16xf32> to vector<4x1x16xf32>
    %cst_4 = arith.constant 8.000000e+00 : f32
    %4 = vector.broadcast %cst_4 : f32 to vector<4x1x16xf32>
    %5 = arith.divf %3, %4 : vector<4x1x16xf32>
    %6 = vector.broadcast %5 : vector<4x1x16xf32> to vector<4x8x16xf32>
    %7 = arith.subf %0, %6 : vector<4x8x16xf32>
    %c0_5 = arith.constant 0 : index
    %c0_6 = arith.constant 0 : index
    %8 = vector.load %arg2[%c0_5, %c0_6] : memref<16x32xf32, #tpu.memory_space<vmem>>, vector<16x32xf32>
    "tpu.trace_start"() <{level = 10 : i32, message = "bni,io->bno"}> : () -> ()
    %cst_7 = arith.constant dense<0.000000e+00> : vector<4x8x32xf32>
    %9 = tpu.matmul %7, %8, %cst_7 {dimension_numbers = #tpu.dot_dimension_numbers<[2], [0], [0, 1], [1], [0, 0, 0, 1, 1, 1], [], []>} : vector<4x8x16xf32>, vector<16x32xf32>, vector<4x8x32xf32> -> vector<4x8x32xf32>
    "tpu.trace_stop"() : () -> ()
    %10 = vector.shape_cast %1 : vector<1x32xf32> to vector<1x1x32xf32>
    %11 = vector.broadcast %10 : vector<1x1x32xf32> to vector<4x8x32xf32>
    %12 = arith.addf %9, %11 : vector<4x8x32xf32>
    %c0_8 = arith.constant 0 : index
    %c0_9 = arith.constant 0 : index
    %c0_10 = arith.constant 0 : index
    %13 = vector.load %arg4[%c0_8, %c0_9, %c0_10] : memref<4x8x32xf32, #tpu.memory_space<vmem>>, vector<4x8x32xf32>
    tpu.vector_store %arg4[%c0_8, %c0_9, %c0_10], %12 {strides = array<i32>} : memref<4x8x32xf32, #tpu.memory_space<vmem>>, vector<4x8x32xf32>,
    return
  }
  func.func @transform_0(%arg0: i32) -> (i32, i32, i32) {
    %c0_i32 = arith.constant 0 : i32
    %c0_i32_0 = arith.constant 0 : i32
    %c0_i32_1 = arith.constant 0 : i32
    return %arg0, %c0_i32, %c0_i32_0 : i32, i32, i32
  }
  func.func @transform_1(%arg0: i32) -> (i32, i32) {
    %c0_i32 = arith.constant 0 : i32
    %c0_i32_0 = arith.constant 0 : i32
    %c0_i32_1 = arith.constant 0 : i32
    return %c0_i32, %c0_i32_0 : i32, i32
  }
  func.func @transform_2(%arg0: i32) -> (i32, i32) {
    %c0_i32 = arith.constant 0 : i32
    %c0_i32_0 = arith.constant 0 : i32
    %c0_i32_1 = arith.constant 0 : i32
    return %c0_i32, %c0_i32_0 : i32, i32
  }
  func.func @transform_3(%arg0: i32) -> (i32, i32, i32) {
    %c0_i32 = arith.constant 0 : i32
    %c0_i32_0 = arith.constant 0 : i32
    %c0_i32_1 = arith.constant 0 : i32
    return %arg0, %c0_i32, %c0_i32_0 : i32, i32, i32
  }
}

</mosaic_0001>

<llo_original>
// kernel: tpu_custom_call.1
$region0: #{tpu_custom_call.1}
  #allocation0 [shape = 'u32[]', space=smem, size = 0x4, offset = 0x4, fixed_abs, tag = 'smem constant byte address 0x4 - core index']
  #allocation1 [shape = 'u32[144,128]{1,0:T(1,128)}', space=vmem, size = 0x12000, scoped, tag = 'internal scratch']
  %s0 = inlined_call_operand.hbm [shape: f32[8,8,16], index: 0, kind: input, shape index: {}]
  %s1 = inlined_call_operand.hbm [shape: f32[16,32], index: 1, kind: input, shape index: {}]
  %s2 = inlined_call_operand.vmem [shape: f32[1,32], index: 2, kind: input, shape index: {}]
  %s3 = inlined_call_operand.hbm [shape: f32[8,8,32], index: 3, kind: output, shape index: {}]
  %s4 = sld [smem:[#allocation0]]
  $region53: #{tpu_custom_call.1} parent=0
    _
  %s6 = ssub.s32 1, %s4
  %s7 = scalar_select 0, %s6, %s4
  $region1: #{tpu_custom_call.1} parent=0
    #allocation2 [shape = 'u8[32768]{0}', space=vmem, size = 0x8000, scoped, tag = 'input window, operand 0']
    #allocation3 [shape = 's32[2]{0}', space=sflag, size = 0x8, scoped, tag = 'scoped memory for tpu_custom_call.1']
    #allocation4 [shape = 's32[2]{0}', space=sflag, size = 0x8, scoped, tag = 'scoped memory for tpu_custom_call.1']
    #allocation5 [shape = 'u8[8192]{0}', space=vmem, size = 0x2000, scoped, tag = 'input window, operand 1, single buffered']
    #allocation6 [shape = 's32[1]{0}', space=sflag, size = 0x4, scoped, tag = 'scoped memory for tpu_custom_call.1']
    #allocation7 [shape = 'u8[32768]{0}', space=vmem, size = 0x8000, scoped, tag = 'output window, operand 0']
    %8 = vsyncpa [#allocation3], 0
    %s9 = scalar_lea.sflag [#allocation3], 1
    %10 = vsyncpa %s9, 0
    %11 = vsyncpa [#allocation6], 0
    %12 = vsyncpa [#allocation4], 0
    %s13 = scalar_lea.sflag [#allocation4], 1
    %14 = vsyncpa %s13, 0
    loop: start=0, step=1, limit=4
    $region2: #{tpu_custom_call.1} parent=1 // loop_pre_header
      _
    $region3: #{tpu_custom_call.1} parent=1 // loop_header
      %s16 = sphi 0, %s20
      %p17 = scmp.ge.s32.totalorder %s16, 4
      %s26 = sphi 0, %s28
      %s29 = sphi 0, %s26
      %s30 = sphi 0, %s29
      %s46 = sphi 0, %s30
      %s50 = sphi 0, %s50
      %s52 = sphi 0, %s50
      %s53 = sphi 0, %s52
      %s67 = sphi 0, %s53
      %s71 = sphi 0, %s71
      %s73 = sphi 0, %s71
      %s74 = sphi 0, %s73
      %s88 = sphi 0, %s74
      %s94 = sphi 0, %s96
      %s97 = sphi 0, %s94
      %s98 = sphi 0, %s97
      %s114 = sphi 0, %s98
    $region4: #{tpu_custom_call.1} parent=1 // loop_header_branch
      %19 = sbr.rel (%p17) target = $region8
    $region5: #{tpu_custom_call.1} parent=1 // loop_body
      %s21 = ssub.s32 %s16, 1
      %s22 = ssub.s32 %s16, 2
      %s23 = sadd.s32 %s16, 1
      %s24 = ssub.s32 %s16, %s23
      %p25 = scmp.eq.s32.totalorder %s24, 0
      %s27 = sadd.s32 %s26, 1
      %s28 = scalar_select %p25, %s26, %s27
      %p31 = pneg %p25
      %p32 = scmp.eq.s32.totalorder %s16, 1
      %p33 = por %p31, %p32
      %p34 = scmp.ne.s32.totalorder %s26, %s29
      %p35 = scmp.eq.s32.totalorder %s16, 0
      %p36 = por %p34, %p35
      %p37 = scmp.ne.s32.totalorder %s26, %s29
      %p38 = scmp.eq.s32.totalorder %s21, 1
      %p39 = por %p37, %p38
      %p40 = scmp.ne.s32.totalorder %s29, %s30
      %p41 = scmp.eq.s32.totalorder %s21, 0
      %p42 = por %p40, %p41
      %p43 = scmp.ne.s32.totalorder %s29, %s30
      %p44 = scmp.eq.s32.totalorder %s22, 1
      %p45 = por %p43, %p44
      %p47 = scmp.ne.s32.totalorder %s30, %s46
      %p48 = scmp.eq.s32.totalorder %s22, 0
      %p49 = por %p47, %p48
      %s51 = sadd.s32 %s50, 1
      %p54 = scmp.eq.s32.totalorder %s16, 1
      %p55 = scmp.ne.s32.totalorder %s50, %s52
      %p56 = scmp.eq.s32.totalorder %s16, 0
      %p57 = por %p55, %p56
      %p58 = scmp.ne.s32.totalorder %s50, %s52
      %p59 = scmp.eq.s32.totalorder %s21, 1
      %p60 = por %p58, %p59
      %p61 = scmp.ne.s32.totalorder %s52, %s53
      %p62 = scmp.eq.s32.totalorder %s21, 0
      %p63 = por %p61, %p62
      %p64 = scmp.ne.s32.totalorder %s52, %s53
      %p65 = scmp.eq.s32.totalorder %s22, 1
      %p66 = por %p64, %p65
      %p68 = scmp.ne.s32.totalorder %s53, %s67
      %p69 = scmp.eq.s32.totalorder %s22, 0
      %p70 = por %p68, %p69
      %s72 = sadd.s32 %s71, 1
      %p75 = scmp.eq.s32.totalorder %s16, 1
      %p76 = scmp.ne.s32.totalorder %s71, %s73
      %p77 = scmp.eq.s32.totalorder %s16, 0
      %p78 = por %p76, %p77
      %p79 = scmp.ne.s32.totalorder %s71, %s73
      %p80 = scmp.eq.s32.totalorder %s21, 1
      %p81 = por %p79, %p80
      %p82 = scmp.ne.s32.totalorder %s73, %s74
      %p83 = scmp.eq.s32.totalorder %s21, 0
      %p84 = por %p82, %p83
      %p85 = scmp.ne.s32.totalorder %s73, %s74
      %p86 = scmp.eq.s32.totalorder %s22, 1
      %p87 = por %p85, %p86
      %p89 = scmp.ne.s32.totalorder %s74, %s88
      %p90 = scmp.eq.s32.totalorder %s22, 0
      %p91 = por %p89, %p90
      %s92 = ssub.s32 %s16, %s23
      %p93 = scmp.eq.s32.totalorder %s92, 0
      %s95 = sadd.s32 %s94, 1
      %s96 = scalar_select %p93, %s94, %s95
      %p99 = pneg %p93
      %p100 = scmp.eq.s32.totalorder %s16, 1
      %p101 = por %p99, %p100
      %p102 = scmp.ne.s32.totalorder %s94, %s97
      %p103 = scmp.eq.s32.totalorder %s16, 0
      %p104 = por %p102, %p103
      %p105 = scmp.ne.s32.totalorder %s94, %s97
      %p106 = scmp.eq.s32.totalorder %s21, 1
      %p107 = por %p105, %p106
      %p108 = scmp.ne.s32.totalorder %s97, %s98
      %p109 = scmp.eq.s32.totalorder %s21, 0
      %p110 = por %p108, %p109
      %p111 = scmp.ne.s32.totalorder %s97, %s98
      %p112 = scmp.eq.s32.totalorder %s22, 1
      %p113 = por %p111, %p112
      %p115 = scmp.ne.s32.totalorder %s98, %s114
      %p116 = scmp.eq.s32.totalorder %s22, 0
      %p117 = por %p115, %p116
      %p118 = scmp.le.s32.totalorder 1, %s16
      %p119 = scmp.lt.s32.totalorder %s16, 3
      %p120 = pnand %p118, %p119
      %p121 = pneg %p120
      // Predicated region
      $region9: #{tpu_custom_call.1} parent=5 // pred_check
        _
      $region10: #{tpu_custom_call.1} parent=5 // pred_check_branch
        %123 = sbr.rel (%p120) target = $region12
      $region11: #{tpu_custom_call.1} parent=5 // pred_region
        %s124 = ssub.s32 %s16, 1
        // Predicated region
        $region13: #{tpu_custom_call.1} parent=11 // pred_check
          %p125 = pneg %p63
        $region14: #{tpu_custom_call.1} parent=11 // pred_check_branch
          %127 = sbr.rel (%p125) target = $region16
        $region15: #{tpu_custom_call.1} parent=11 // pred_region
          %s129 = ssub.s32 256, 256
          %130 = vsyncadd [#allocation6], %s129
          %s131 = sshll.u32 [#allocation5], 4
          %s132 = int_to_ptr.vmem [resolvable:$true] %s131
          %137 = dma.hbm_to_vmem [thread:$0]  %s1, 256, %s132, [#allocation6], 128, 128, 8
        $region16: #{tpu_custom_call.1} parent=11 // pred_fallthru
          _
        // Predicated region
        $region17: #{tpu_custom_call.1} parent=11 // pred_check
          %p138 = pneg %p84
        $region18: #{tpu_custom_call.1} parent=11 // pred_check_branch
          %140 = sbr.rel (%p138) target = $region20
        $region19: #{tpu_custom_call.1} parent=11 // pred_region
          _
        $region20: #{tpu_custom_call.1} parent=11 // pred_fallthru
          _
      $region12: #{tpu_custom_call.1} parent=5 // pred_fallthru
        _
      %p141 = scmp.lt.s32.totalorder %s16, 2
      // Predicated region
      $region21: #{tpu_custom_call.1} parent=5 // pred_check
        %p142 = pneg %p141
      $region22: #{tpu_custom_call.1} parent=5 // pred_check_branch
        %144 = sbr.rel (%p142) target = $region24
      $region23: #{tpu_custom_call.1} parent=5 // pred_region
        // Predicated region
        $region25: #{tpu_custom_call.1} parent=23 // pred_check
          %p145 = pneg %p36
        $region26: #{tpu_custom_call.1} parent=23 // pred_check_branch
          %147 = sbr.rel (%p145) target = $region28
        $region27: #{tpu_custom_call.1} parent=23 // pred_region
          %s148 = sand.u32 %s26, 1
          %s149 = scalar_lea.sflag [#allocation3], %s148
          %s150 = sand.u32 %s26, 1
          %s151 = smul.addr %s150, 32
          %s152 = scalar_lea.vmem [#allocation2], %s151
          %s153 = smul.u32 4, %s16
          %s155 = ssub.s32 512, 512
          %156 = vsyncadd %s149, %s155
          %s157 = smul.addr %s153, 128
          %s158 = scalar_lea.hbm %s0, %s157
          %s159 = sshll.u32 %s152, 4
          %s160 = int_to_ptr.vmem [resolvable:$true] %s159
          %165 = dma.hbm_to_vmem [thread:$0]  %s158, 512, %s160, %s149, 128, 128, 8
        $region28: #{tpu_custom_call.1} parent=23 // pred_fallthru
          _
      $region24: #{tpu_custom_call.1} parent=5 // pred_fallthru
        _
      %p166 = scmp.le.s32.totalorder 1, %s16
      %p167 = scmp.lt.s32.totalorder %s16, 3
      %p168 = pnand %p166, %p167
      %p169 = pneg %p168
      // Predicated region
      $region29: #{tpu_custom_call.1} parent=5 // pred_check
        _
      $region30: #{tpu_custom_call.1} parent=5 // pred_check_branch
        %171 = sbr.rel (%p168) target = $region32
      $region31: #{tpu_custom_call.1} parent=5 // pred_region
        %s172 = ssub.s32 %s16, 1
        %s173 = sand.u32 %s29, 1
        %s174 = scalar_lea.sflag [#allocation3], %s173
        %s175 = sand.u32 %s29, 1
        %s176 = smul.addr %s175, 32
        %s177 = scalar_lea.vmem [#allocation2], %s176
        // Predicated region
        $region33: #{tpu_custom_call.1} parent=31 // pred_check
          %p178 = pneg %p42
        $region34: #{tpu_custom_call.1} parent=31 // pred_check_branch
          %180 = sbr.rel (%p178) target = $region36
        $region35: #{tpu_custom_call.1} parent=31 // pred_region
          %181 = dma.done %s174, 512
        $region36: #{tpu_custom_call.1} parent=31 // pred_fallthru
          _
        // Predicated region
        $region37: #{tpu_custom_call.1} parent=31 // pred_check
          %p182 = pneg %p63
        $region38: #{tpu_custom_call.1} parent=31 // pred_check_branch
          %184 = sbr.rel (%p182) target = $region40
        $region39: #{tpu_custom_call.1} parent=31 // pred_region
          %185 = dma.done [#allocation6], 256
        $region40: #{tpu_custom_call.1} parent=31 // pred_fallthru
          _
        %s186 = sand.u32 %s29, 1
        %s187 = scalar_lea.sflag [#allocation3], %s186
        %s188 = sand.u32 %s29, 1
        %s189 = smul.addr %s188, 32
        %s190 = scalar_lea.vmem [#allocation2], %s189
        %p191 = pneg %p42
        %p192 = pneg %p39
        %p193 = pneg %p63
        %p194 = pneg %p60
        %p195 = pneg %p84
        %p196 = pneg %p81
        %p197 = pneg %p110
        %p198 = pneg %p107
        %s199 = sand.u32 %s97, 1
        %s200 = scalar_lea.sflag [#allocation4], %s199
        %s201 = sand.u32 %s97, 1
        %s202 = smul.addr %s201, 32
        %s203 = scalar_lea.vmem [#allocation7], %s202
        %s204 = smul.u32 4, %s21
        %s205 = smul.u32 4, %s21
        %v206 = vld [vmem:[%s177] sm:$0xff]
        %v207 = vld [vmem:[%s177 + $0x8] sm:$0xff]
        %v208 = vld [vmem:[%s177 + $0x10] sm:$0xff]
        %v209 = vld [vmem:[%s177 + $0x18] sm:$0xff]
        %v210 = vld [vmem:[%s2] sm:$0x1]
        %vm211 = vcmask 130048
        %v212 = vsel %vm211, %v206, 0.0
        %v213 = vrot.slane %v212, 4
        %v214 = vadd.f32 %v212, %v213
        %v215 = vrot.slane %v214, 2
        %v216 = vadd.f32 %v214, %v215
        %v217 = vrot.slane %v216, 1
        %v218 = vadd.f32 %v216, %v217
        %v219 = vsel %vm211, %v207, 0.0
        %v220 = vrot.slane %v219, 4
        %v221 = vadd.f32 %v219, %v220
        %v222 = vrot.slane %v221, 2
        %v223 = vadd.f32 %v221, %v222
        %v224 = vrot.slane %v223, 1
        %v225 = vadd.f32 %v223, %v224
        %v226 = vsel %vm211, %v208, 0.0
        %v227 = vrot.slane %v226, 4
        %v228 = vadd.f32 %v226, %v227
        %v229 = vrot.slane %v228, 2
        %v230 = vadd.f32 %v228, %v229
        %v231 = vrot.slane %v230, 1
        %v232 = vadd.f32 %v230, %v231
        %v233 = vsel %vm211, %v209, 0.0
        %v234 = vrot.slane %v233, 4
        %v235 = vadd.f32 %v233, %v234
        %v236 = vrot.slane %v235, 2
        %v237 = vadd.f32 %v235, %v236
        %v238 = vrot.slane %v237, 1
        %v239 = vadd.f32 %v237, %v238
        %v240 = vrcp.pop 8.0
        %v241 = vmul.f32 %v218, %v240
        %v242 = vmul.f32 %v225, %v240
        %v243 = vmul.f32 %v232, %v240
        %v244 = vmul.f32 %v239, %v240
        %v245 = vsub.f32 %v206, %v241
        %v246 = vsub.f32 %v207, %v242
        %v247 = vsub.f32 %v208, %v243
        %v248 = vsub.f32 %v209, %v244
        %v249 = vld [vmem:[#allocation5] sm:$0xff]
        %v250 = vld [vmem:[#allocation5 + $0x8] sm:$0xff]
        %v252 = vlaneseq
        %v253 = vshrl.u32 %v252, 7
        %v254 = vsub.s32 0, %v253
        %v255 = vrot.slane %v210, %v254
        %v258 = vsel %vm211, %v245, 0
        %v261 = vsel %vm211, %v246, 0
        %v264 = vsel %vm211, %v247, 0
        %v267 = vsel %vm211, %v248, 0
        %269 = vmatprep.subr.mxu0 0.0
        %270 = vmatpush1.msra.mxu0 %v249
        %271 = vmatprep.subr.mxu0 0.0
        %272 = vmatpush1.msra.mxu0 %v250
        %273 = vmatprep.subr.mxu0 0.0
        %274 = vmatpush1.msra.mxu0 0.0
        %275 = vmatprep.subr.mxu0 0.0
        %276 = vmatpush1.msra.mxu0 0.0
        %277 = vmatprep.subr.mxu0 0.0
        %278 = vmatpush1.msra.mxu0 0.0
        %279 = vmatprep.subr.mxu0 0.0
        %280 = vmatpush1.msra.mxu0 0.0
        %281 = vmatprep.subr.mxu0 0.0
        %282 = vmatpush1.msra.mxu0 0.0
        %283 = vmatprep.subr.mxu0 0.0
        %284 = vmatpush1.msra.mxu0 0.0
        %285 = vmatprep.subr.mxu0 0.0
        %286 = vmatpush1.msra.mxu0 0.0
        %287 = vmatprep.subr.mxu0 0.0
        %288 = vmatpush1.msra.mxu0 0.0
        %289 = vmatprep.subr.mxu0 0.0
        %290 = vmatpush1.msra.mxu0 0.0
        %291 = vmatprep.subr.mxu0 0.0
        %292 = vmatpush1.msra.mxu0 0.0
        %293 = vmatprep.subr.mxu0 0.0
        %294 = vmatpush1.msra.mxu0 0.0
        %295 = vmatprep.subr.mxu0 0.0
        %296 = vmatpush1.msra.mxu0 0.0
        %297 = vmatprep.subr.mxu0 0.0
        %298 = vmatpush1.msra.mxu0 0.0
        %299 = vmatprep.subr.mxu0 0.0
        %300 = vmatpush1.msra.mxu0 0.0
        %301 = vmatprep.subr.mxu0 0.0
        %302 = vmatpush1.msra.mxu0 0.0
        %303 = vmatprep.subr.mxu0 0.0
        %304 = vmatpush1.msra.mxu0 0.0
        %305 = vmatprep.subr.mxu0 0.0
        %306 = vmatpush1.msra.mxu0 0.0
        %307 = vmatprep.subr.mxu0 0.0
        %308 = vmatpush1.msra.mxu0 0.0
        %309 = vmatprep.subr.mxu0 0.0
        %310 = vmatpush1.msra.mxu0 0.0
        %311 = vmatprep.subr.mxu0 0.0
        %312 = vmatpush1.msra.mxu0 0.0
        %313 = vmatprep.subr.mxu0 0.0
        %314 = vmatpush1.msra.mxu0 0.0
        %315 = vmatprep.subr.mxu0 0.0
        %316 = vmatpush1.msra.mxu0 0.0
        %317 = vmatprep.subr.mxu0 0.0
        %318 = vmatpush1.msra.mxu0 0.0
        %319 = vmatprep.subr.mxu0 0.0
        %320 = vmatpush1.msra.mxu0 0.0
        %321 = vmatprep.subr.mxu0 0.0
        %322 = vmatpush1.msra.mxu0 0.0
        %323 = vmatprep.subr.mxu0 0.0
        %324 = vmatpush1.msra.mxu0 0.0
        %325 = vmatprep.subr.mxu0 0.0
        %326 = vmatpush1.msra.mxu0 0.0
        %327 = vmatprep.subr.mxu0 0.0
        %328 = vmatpush1.msra.mxu0 0.0
        %329 = vmatprep.subr.mxu0 0.0
        %330 = vmatpush1.msra.mxu0 0.0
        %331 = vmatprep.subr.mxu0 0.0
        %332 = vmatpush1.msra.mxu0 0.0
        %333 = vmatprep.mubr.f32.mxu0 0.0
        %334 = vmatmul.mubr.f32.gmra.mrb[0].mxu0 %v258
        %v335 = vpop.f32.mrb[0].mxu0
        %v336 = vadd.f32 %v255, %v335
        %v337 = vpop.f32.mrb[0].mxu0
        %338 = vmatprep.mubr.f32.mxu0 0.0
        %339 = vmatmul.mubr.f32.gmra.mrb[0].mxu0 %v261
        %v340 = vpop.f32.mrb[0].mxu0
        %v341 = vadd.f32 %v255, %v340
        %v342 = vpop.f32.mrb[0].mxu0
        %343 = vmatprep.mubr.f32.mxu0 0.0
        %344 = vmatmul.mubr.f32.gmra.mrb[0].mxu0 %v264
        %v345 = vpop.f32.mrb[0].mxu0
        %v346 = vadd.f32 %v255, %v345
        %v347 = vpop.f32.mrb[0].mxu0
        %348 = vmatprep.mubr.f32.mxu0 0.0
        %349 = vmatmul.mubr.f32.gmra.mrb[0].mxu0 %v267
        %v350 = vpop.f32.mrb[0].mxu0
        %v351 = vadd.f32 %v255, %v350
        %v352 = vpop.f32.mrb[0].mxu0
        %353 = vdwg.mxu0
        %vm354 = vcmask 261120
        %355 = vst.msk [vmem:[%s203] sm:$0xff] %vm354, %v336
        %356 = vst.msk [vmem:[%s203 + $0x8] sm:$0xff] %vm354, %v341
        %357 = vst.msk [vmem:[%s203 + $0x10] sm:$0xff] %vm354, %v346
        %358 = vst.msk [vmem:[%s203 + $0x18] sm:$0xff] %vm354, %v351
        %s359 = sand.u32 %s97, 1
        %s360 = scalar_lea.sflag [#allocation4], %s359
        %s361 = sand.u32 %s97, 1
        %s362 = smul.addr %s361, 32
        %s363 = scalar_lea.vmem [#allocation7], %s362
        // Predicated region
        $region41: #{tpu_custom_call.1} parent=31 // pred_check
          %p364 = pneg %p107
        $region42: #{tpu_custom_call.1} parent=31 // pred_check_branch
          %366 = sbr.rel (%p364) target = $region44
        $region43: #{tpu_custom_call.1} parent=31 // pred_region
          %s367 = smul.u32 4, %s21
          %s369 = ssub.s32 512, 512
          %370 = vsyncadd %s360, %s369
          %s371 = smul.addr %s367, 128
          %s372 = scalar_lea.hbm %s3, %s371
          %s373 = sshll.u32 %s363, 4
          %s374 = int_to_ptr.vmem [resolvable:$true] %s373
          %379 = dma.vmem_to_hbm [thread:$0]  %s374, 512, %s372, %s360, 128, 128, 8
        $region44: #{tpu_custom_call.1} parent=31 // pred_fallthru
          _
      $region32: #{tpu_custom_call.1} parent=5 // pred_fallthru
        _
      %p380 = scmp.le.s32.totalorder 2, %s16
      // Predicated region
      $region45: #{tpu_custom_call.1} parent=5 // pred_check
        %p381 = pneg %p380
      $region46: #{tpu_custom_call.1} parent=5 // pred_check_branch
        %383 = sbr.rel (%p381) target = $region48
      $region47: #{tpu_custom_call.1} parent=5 // pred_region
        %s384 = ssub.s32 %s16, 2
        // Predicated region
        $region49: #{tpu_custom_call.1} parent=47 // pred_check
          %p385 = pneg %p113
        $region50: #{tpu_custom_call.1} parent=47 // pred_check_branch
          %387 = sbr.rel (%p385) target = $region52
        $region51: #{tpu_custom_call.1} parent=47 // pred_region
          %s388 = sand.u32 %s98, 1
          %s389 = scalar_lea.sflag [#allocation4], %s388
          %s390 = sand.u32 %s98, 1
          %s391 = smul.addr %s390, 32
          %s392 = scalar_lea.vmem [#allocation7], %s391
          %393 = dma.done %s389, 512
        $region52: #{tpu_custom_call.1} parent=47 // pred_fallthru
          _
      $region48: #{tpu_custom_call.1} parent=5 // pred_fallthru
        _
    $region6: #{tpu_custom_call.1} parent=1 // loop_footer
      %s20 = sadd.s32 1, %s16
    $region7: #{tpu_custom_call.1} parent=1 // loop_footer_branch
      %15 = sbr.rel target = $region3
    $region8: #{tpu_custom_call.1} parent=1 // loop_exit
      _
    %394 = vsyncpa [#allocation3], 1
    %s395 = scalar_lea.sflag [#allocation3], 1
    %396 = vsyncpa %s395, 1
    %397 = vsyncpa [#allocation6], 1
    %398 = vsyncpa [#allocation4], 1
    %s399 = scalar_lea.sflag [#allocation4], 1
    %400 = vsyncpa %s399, 1

</llo_original>
